<compile_context>
chip_gen: v6e
topology: v6e:2x2x1
jax: 0.10.0
libtpu: 0.0.40
codegen_flags: <defaults>
</compile_context>

<pallas_src>
import jax
import jax.numpy as jnp
from jax.experimental import pallas as pl
from jax.experimental.pallas import tpu as pltpu

STATE_DIM = 29
ACTION_DIM = 8
HIDDEN = 256
K_IN = STATE_DIM + ACTION_DIM      # 37 real input features
K_PACK = 40                        # 37 features + 1 ones column (bias) + pad


def _critic_kernel(x_ref, w1_ref, w2_ref, b2_ref, w3_ref, b3_ref, o_ref):
    # fc1 + ReLU. b1 is folded into w1 via the ones column of x; bf16 MXU
    # matmul with f32 accumulation.
    h1 = jnp.dot(x_ref[...], w1_ref[...], preferred_element_type=jnp.float32)
    h1 = jnp.maximum(h1, 0.0)

    # fc2 + bias + ReLU (dominant MACs: 256x256 bf16 on the MXU).
    # Bias/ReLU kept in f32 (safe on v5e's f32-only VPU).
    # TODO(synk): on v6e/v7x a bf16 epilogue would halve VALU-slot pressure.
    h2 = jnp.dot(h1.astype(jnp.bfloat16), w2_ref[...],
                 preferred_element_type=jnp.float32)
    h2 = jnp.maximum(h2 + b2_ref[...], 0.0)

    # fc3: (tb,256)@(256,1) would use 1 of 256 MXU result columns; use a VPU
    # broadcast-multiply + XLU lane reduction instead (f32).
    q = jnp.sum(h2 * w3_ref[...], axis=-1, keepdims=True) + b3_ref[...]
    o_ref[...] = q.astype(o_ref.dtype)


def _round_up(x, m):
    return (x + m - 1) // m * m


def _pick_batch_tile(B, block_b):
    # Rows per grid step: multiple of 128 (MXU M-efficiency, sublane tiling),
    # capped at block_b; big enough to amortize ~0.35us/step grid overhead,
    # but split into >= 2 steps for large B so v7x's two TCs both get work.
    tb = min(block_b, _round_up(B, 128))
    if B > 256 and pl.cdiv(B, tb) < 2:
        tb = min(block_b, _round_up(pl.cdiv(B, 2), 128))
    return tb


def critic_forward(state, action, params, *, block_b=2048):
    """state: (B, STATE_DIM) f32, action: (B, ACTION_DIM) f32 -> (B, 1) f32."""
    w1, b1, w2, b2, w3, b3 = params
    B = state.shape[0]

    # ---- host-side packing (one bf16 input stream, bias-ones column) ----
    x = jnp.concatenate(
        [state, action,
         jnp.ones((B, 1), jnp.float32),
         jnp.zeros((B, K_PACK - K_IN - 1), jnp.float32)],
        axis=1).astype(jnp.bfloat16)                      # (B, 40) bf16

    w1p = jnp.concatenate(
        [w1, b1.reshape(1, HIDDEN),
         jnp.zeros((K_PACK - K_IN - 1, HIDDEN), jnp.float32)],
        axis=0).astype(jnp.bfloat16)                      # (40, 256) bf16
    w2b = w2.astype(jnp.bfloat16)                         # (256, 256) bf16
    b2r = b2.reshape(1, HIDDEN).astype(jnp.float32)       # (1, 256)
    w3r = w3.reshape(1, HIDDEN).astype(jnp.float32)       # (1, 256)
    b3r = b3.reshape(1, 1).astype(jnp.float32)            # (1, 1)

    # ---- batch tiling ----
    tb = _pick_batch_tile(B, block_b)
    bp = _round_up(B, tb)
    if bp != B:
        x = jnp.pad(x, ((0, bp - B), (0, 0)))
    grid = (bp // tb,)

    def batch_spec(cols):
        return pl.BlockSpec((tb, cols), lambda i: (i, 0))

    def const_spec(shape):
        # Constant block index -> DMA'd once, VMEM-resident across all tiles.
        return pl.BlockSpec(shape, lambda i: (0, 0))

    out = pl.pallas_call(
        _critic_kernel,
        out_shape=jax.ShapeDtypeStruct((bp, 1), jnp.float32),
        grid=grid,
        in_specs=[
            batch_spec(K_PACK),                 # packed [state|action|1|pad]
            const_spec((K_PACK, HIDDEN)),       # w1 (+ b1 row)
            const_spec((HIDDEN, HIDDEN)),       # w2
            const_spec((1, HIDDEN)),            # b2
            const_spec((1, HIDDEN)),            # w3 as a row
            const_spec((1, 1)),                 # b3
        ],
        out_specs=batch_spec(1),
        compiler_params=pltpu.CompilerParams(
            dimension_semantics=("parallel",),   # shard batch tiles across TCs
            vmem_limit_bytes=32 * 1024 * 1024),
    )(x, w1p, w2b, b2r, w3r, b3r)

    return out[:B]


def init_params(key):
    """Deterministic init matching the torch.nn.Linear shapes (fan_in uniform)."""
    ks = jax.random.split(key, 6)
    in1 = STATE_DIM + ACTION_DIM

    def uni(k, shape, fan_in):
        bound = 1.0 / jnp.sqrt(fan_in)
        return jax.random.uniform(k, shape, jnp.float32, -bound, bound)

    w1 = uni(ks[0], (in1, HIDDEN), in1)
    b1 = uni(ks[1], (1, HIDDEN), in1)
    w2 = uni(ks[2], (HIDDEN, HIDDEN), HIDDEN)
    b2 = uni(ks[3], (1, HIDDEN), HIDDEN)
    w3 = uni(ks[4], (HIDDEN, 1), HIDDEN)
    b3 = uni(ks[5], (1, 1), HIDDEN)
    return (w1, b1, w2, b2, w3, b3)


def critic_reference(state, action, params):
    """Pure-JAX f32 reference of the PyTorch forward for validation."""
    w1, b1, w2, b2, w3, b3 = params
    x = jnp.concatenate([state, action], axis=1)
    x = jax.nn.relu(x @ w1 + b1)
    x = jax.nn.relu(x @ w2 + b2)
    return x @ w3 + b3


if __name__ == "__main__":
    key = jax.random.PRNGKey(0)
    k_param, k_state, k_action = jax.random.split(key, 3)
    params = init_params(k_param)

    # Small-shape smoke test (single batch tile).
    B = 8
    state = jax.random.normal(k_state, (B, STATE_DIM), jnp.float32)
    action = jax.random.normal(k_action, (B, ACTION_DIM), jnp.float32)
    out = jax.block_until_ready(critic_forward(state, action, params))
    ref = critic_reference(state, action, params)
    assert out.shape == (B, 1), out.shape
    # bf16 inputs/weights (f32 accumulation) vs. f32 reference -> loose tol.
    assert jnp.allclose(out, ref, atol=3e-2, rtol=3e-2), (out, ref)

    # Multi-tile path: grid of 2 batch tiles plus padded tail rows sliced off.
    B2 = 300
    state2 = jax.random.normal(jax.random.PRNGKey(1), (B2, STATE_DIM), jnp.float32)
    action2 = jax.random.normal(jax.random.PRNGKey(2), (B2, ACTION_DIM), jnp.float32)
    out2 = jax.block_until_ready(critic_forward(state2, action2, params))
    ref2 = critic_reference(state2, action2, params)
    assert out2.shape == (B2, 1), out2.shape
    assert jnp.allclose(out2, ref2, atol=3e-2, rtol=3e-2), (out2, ref2)

    print("KERNEL_OK")
</pallas_src>

<mosaic_0001>
module attributes {stable_mosaic.version = 11 : i64} {
  func.func @_critic_kernel(%arg0: i32, %arg1: memref<128x40xbf16, #tpu.memory_space<vmem>>, %arg2: memref<40x256xbf16, #tpu.memory_space<vmem>>, %arg3: memref<256x256xbf16, #tpu.memory_space<vmem>>, %arg4: memref<1x256xf32, #tpu.memory_space<vmem>>, %arg5: memref<1x256xf32, #tpu.memory_space<vmem>>, %arg6: memref<1x1xf32, #tpu.memory_space<vmem>>, %arg7: memref<128x1xf32, #tpu.memory_space<vmem>>) attributes {dimension_semantics = [#tpu.dimension_semantics<parallel>], iteration_bounds = array<i64: 1>, scalar_prefetch = 0 : i64, scratch_operands = 0 : i64, tpu.core_type = #tpu.core_type<tc>, window_params = [{transform_indices = @transform_0, window_bounds = array<i64: 128, 40>}, {pipeline_mode = #tpu.pipeline_mode<synchronous>, transform_indices = @transform_1, window_bounds = array<i64: 40, 256>}, {pipeline_mode = #tpu.pipeline_mode<synchronous>, transform_indices = @transform_2, window_bounds = array<i64: 256, 256>}, {pipeline_mode = #tpu.pipeline_mode<synchronous>, transform_indices = @transform_3, window_bounds = array<i64: 1, 256>}, {pipeline_mode = #tpu.pipeline_mode<synchronous>, transform_indices = @transform_4, window_bounds = array<i64: 1, 256>}, {pipeline_mode = #tpu.pipeline_mode<synchronous>, transform_indices = @transform_5, window_bounds = array<i64: 1, 1>}, {transform_indices = @transform_6, window_bounds = array<i64: 128, 1>}]} {
    %c0 = arith.constant 0 : index
    %c0_0 = arith.constant 0 : index
    %0 = vector.load %arg1[%c0, %c0_0] : memref<128x40xbf16, #tpu.memory_space<vmem>>, vector<128x40xbf16>
    %c0_1 = arith.constant 0 : index
    %c0_2 = arith.constant 0 : index
    %1 = vector.load %arg2[%c0_1, %c0_2] : memref<40x256xbf16, #tpu.memory_space<vmem>>, vector<40x256xbf16>
    %cst = arith.constant dense<0.000000e+00> : vector<128x256xf32>
    %2 = tpu.matmul %0, %1, %cst {dimension_numbers = #tpu.dot_dimension_numbers<[1], [0], [0], [1], [0, 0, 1, 1], [], []>} : vector<128x40xbf16>, vector<40x256xbf16>, vector<128x256xf32> -> vector<128x256xf32>
    %cst_3 = arith.constant 0.000000e+00 : f32
    %3 = vector.broadcast %cst_3 : f32 to vector<128x256xf32>
    %4 = arith.maximumf %2, %3 : vector<128x256xf32>
    %5 = arith.truncf %4 : vector<128x256xf32> to vector<128x256xbf16>
    %c0_4 = arith.constant 0 : index
    %c0_5 = arith.constant 0 : index
    %6 = vector.load %arg3[%c0_4, %c0_5] : memref<256x256xbf16, #tpu.memory_space<vmem>>, vector<256x256xbf16>
    %cst_6 = arith.constant dense<0.000000e+00> : vector<128x256xf32>
    %7 = tpu.matmul %5, %6, %cst_6 {dimension_numbers = #tpu.dot_dimension_numbers<[1], [0], [0], [1], [0, 0, 1, 1], [], []>} : vector<128x256xbf16>, vector<256x256xbf16>, vector<128x256xf32> -> vector<128x256xf32>
    %c0_7 = arith.constant 0 : index
    %c0_8 = arith.constant 0 : index
    %8 = vector.load %arg4[%c0_7, %c0_8] : memref<1x256xf32, #tpu.memory_space<vmem>>, vector<1x256xf32>
    %9 = vector.broadcast %8 : vector<1x256xf32> to vector<128x256xf32>
    %10 = arith.addf %7, %9 : vector<128x256xf32>
    %cst_9 = arith.constant 0.000000e+00 : f32
    %11 = vector.broadcast %cst_9 : f32 to vector<128x256xf32>
    %12 = arith.maximumf %10, %11 : vector<128x256xf32>
    %c0_10 = arith.constant 0 : index
    %c0_11 = arith.constant 0 : index
    %13 = vector.load %arg5[%c0_10, %c0_11] : memref<1x256xf32, #tpu.memory_space<vmem>>, vector<1x256xf32>
    %14 = vector.broadcast %13 : vector<1x256xf32> to vector<128x256xf32>
    %15 = arith.mulf %12, %14 : vector<128x256xf32>
    %cst_12 = arith.constant dense<0.000000e+00> : vector<128xf32>
    %16 = vector.multi_reduction <add>, %15, %cst_12 [1] : vector<128x256xf32> to vector<128xf32>
    %17 = vector.shape_cast %16 : vector<128xf32> to vector<128x1xf32>
    %c0_13 = arith.constant 0 : index
    %c0_14 = arith.constant 0 : index
    %18 = vector.load %arg6[%c0_13, %c0_14] : memref<1x1xf32, #tpu.memory_space<vmem>>, vector<1x1xf32>
    %19 = vector.broadcast %18 : vector<1x1xf32> to vector<128x1xf32>
    %20 = arith.addf %17, %19 : vector<128x1xf32>
    %c0_15 = arith.constant 0 : index
    %c0_16 = arith.constant 0 : index
    %21 = vector.load %arg7[%c0_15, %c0_16] : memref<128x1xf32, #tpu.memory_space<vmem>>, vector<128x1xf32>
    tpu.vector_store %arg7[%c0_15, %c0_16], %20 {strides = array<i32>} : memref<128x1xf32, #tpu.memory_space<vmem>>, vector<128x1xf32>,
    return
  }
  func.func @transform_0(%arg0: i32) -> (i32, i32) {
    %c0_i32 = arith.constant 0 : i32
    %c0_i32_0 = arith.constant 0 : i32
    return %arg0, %c0_i32 : i32, i32
  }
  func.func @transform_1(%arg0: i32) -> (i32, i32) {
    %c0_i32 = arith.constant 0 : i32
    %c0_i32_0 = arith.constant 0 : i32
    %c0_i32_1 = arith.constant 0 : i32
    return %c0_i32, %c0_i32_0 : i32, i32
  }
  func.func @transform_2(%arg0: i32) -> (i32, i32) {
    %c0_i32 = arith.constant 0 : i32
    %c0_i32_0 = arith.constant 0 : i32
    %c0_i32_1 = arith.constant 0 : i32
    return %c0_i32, %c0_i32_0 : i32, i32
  }
  func.func @transform_3(%arg0: i32) -> (i32, i32) {
    %c0_i32 = arith.constant 0 : i32
    %c0_i32_0 = arith.constant 0 : i32
    %c0_i32_1 = arith.constant 0 : i32
    return %c0_i32, %c0_i32_0 : i32, i32
  }
  func.func @transform_4(%arg0: i32) -> (i32, i32) {
    %c0_i32 = arith.constant 0 : i32
    %c0_i32_0 = arith.constant 0 : i32
    %c0_i32_1 = arith.constant 0 : i32
    return %c0_i32, %c0_i32_0 : i32, i32
  }
  func.func @transform_5(%arg0: i32) -> (i32, i32) {
    %c0_i32 = arith.constant 0 : i32
    %c0_i32_0 = arith.constant 0 : i32
    %c0_i32_1 = arith.constant 0 : i32
    return %c0_i32, %c0_i32_0 : i32, i32
  }
  func.func @transform_6(%arg0: i32) -> (i32, i32) {
    %c0_i32 = arith.constant 0 : i32
    %c0_i32_0 = arith.constant 0 : i32
    return %arg0, %c0_i32 : i32, i32
  }
}

</mosaic_0001>

<llo_original>
// kernel: tpu_custom_call.1
$region0: #{tpu_custom_call.1}
  #allocation0 [shape = 'u32[]', space=smem, size = 0x4, offset = 0x4, fixed_abs, tag = 'smem constant byte address 0x4 - core index']
  #allocation1 [shape = 'u32[144,128]{1,0:T(1,128)}', space=vmem, size = 0x12000, scoped, tag = 'internal scratch']
  #allocation2 [shape = 'f32[1,1]{1,0:T(1,128)S(1)}', space=vmem, size = 0x200, scoped, tag = 'scoped memory for tpu_custom_call.1']
  %s0 = inlined_call_operand.vmem [shape: bf16[128,40], index: 0, kind: input, shape index: {}]
  %s1 = inlined_call_operand.vmem [shape: bf16[40,256], index: 1, kind: input, shape index: {}]
  %s2 = inlined_call_operand.hbm [shape: bf16[256,256], index: 2, kind: input, shape index: {}]
  %s3 = inlined_call_operand.vmem [shape: f32[1,256], index: 3, kind: input, shape index: {}]
  %s4 = inlined_call_operand.vmem [shape: f32[1,256], index: 4, kind: input, shape index: {}]
  %s5 = inlined_call_operand.<no memory space> [shape: f32[1,1], index: 5, kind: input, shape index: {}]
  %s6 = inlined_call_operand.vmem [shape: f32[128,1], index: 6, kind: output, shape index: {}]
  %s7 = sld [smem:[#allocation0]]
  $region38: #{tpu_custom_call.1} parent=0
    _
  %s9 = ssub.s32 1, %s7
  %s10 = scalar_select 0, %s9, %s7
  %v11 = vstv %s5
  %12 = vst [vmem:[#allocation2] sm:$0x1] %v11
  $region1: #{tpu_custom_call.1} parent=0
    #allocation3 [shape = 'u8[131072]{0}', space=vmem, size = 0x20000, scoped, tag = 'input window, operand 2, single buffered']
    #allocation4 [shape = 's32[1]{0}', space=sflag, size = 0x4, scoped, tag = 'scoped memory for tpu_custom_call.1']
    %13 = vsyncpa [#allocation4], 0
    // Predicated region
    $region2: #{tpu_custom_call.1} parent=1 // pred_check
      _
    $region3: #{tpu_custom_call.1} parent=1 // pred_check_branch
      %15 = sbr.rel (0) target = $region5
    $region4: #{tpu_custom_call.1} parent=1 // pred_region
      _
    $region5: #{tpu_custom_call.1} parent=1 // pred_fallthru
      _
    // Predicated region
    $region6: #{tpu_custom_call.1} parent=1 // pred_check
      _
    $region7: #{tpu_custom_call.1} parent=1 // pred_check_branch
      %17 = sbr.rel (0) target = $region9
    $region8: #{tpu_custom_call.1} parent=1 // pred_region
      _
    $region9: #{tpu_custom_call.1} parent=1 // pred_fallthru
      _
    // Predicated region
    $region10: #{tpu_custom_call.1} parent=1 // pred_check
      _
    $region11: #{tpu_custom_call.1} parent=1 // pred_check_branch
      %19 = sbr.rel (0) target = $region13
    $region12: #{tpu_custom_call.1} parent=1 // pred_region
      %s21 = ssub.s32 4096, 4096
      %22 = vsyncadd [#allocation4], %s21
      %s23 = sshll.u32 [#allocation3], 4
      %s24 = int_to_ptr.vmem [resolvable:$true] %s23
      %29 = dma.hbm_to_vmem [thread:$0]  %s2, 4096, %s24, [#allocation4], 128, 128, 8
    $region13: #{tpu_custom_call.1} parent=1 // pred_fallthru
      _
    // Predicated region
    $region14: #{tpu_custom_call.1} parent=1 // pred_check
      _
    $region15: #{tpu_custom_call.1} parent=1 // pred_check_branch
      %31 = sbr.rel (0) target = $region17
    $region16: #{tpu_custom_call.1} parent=1 // pred_region
      _
    $region17: #{tpu_custom_call.1} parent=1 // pred_fallthru
      _
    // Predicated region
    $region18: #{tpu_custom_call.1} parent=1 // pred_check
      _
    $region19: #{tpu_custom_call.1} parent=1 // pred_check_branch
      %33 = sbr.rel (0) target = $region21
    $region20: #{tpu_custom_call.1} parent=1 // pred_region
      _
    $region21: #{tpu_custom_call.1} parent=1 // pred_fallthru
      _
    // Predicated region
    $region22: #{tpu_custom_call.1} parent=1 // pred_check
      _
    $region23: #{tpu_custom_call.1} parent=1 // pred_check_branch
      %35 = sbr.rel (0) target = $region25
    $region24: #{tpu_custom_call.1} parent=1 // pred_region
      _
    $region25: #{tpu_custom_call.1} parent=1 // pred_fallthru
      _
    // Predicated region
    $region26: #{tpu_custom_call.1} parent=1 // pred_check
      _
    $region27: #{tpu_custom_call.1} parent=1 // pred_check_branch
      %37 = sbr.rel (0) target = $region29
    $region28: #{tpu_custom_call.1} parent=1 // pred_region
      %38 = dma.done [#allocation4], 4096
    $region29: #{tpu_custom_call.1} parent=1 // pred_fallthru
      _
    %v40 = vld [vmem:[%s0] sm:$0xf]
    %v41 = vld [vmem:[%s0 + $0x4] sm:$0xf]
    %v42 = vld [vmem:[%s0 + $0x8] sm:$0xf]
    %v43 = vld [vmem:[%s0 + $0xc] sm:$0xf]
    %v44 = vld [vmem:[%s0 + $0x10] sm:$0xf]
    %v45 = vld [vmem:[%s0 + $0x14] sm:$0xf]
    %v46 = vld [vmem:[%s0 + $0x18] sm:$0xf]
    %v47 = vld [vmem:[%s0 + $0x1c] sm:$0xf]
    %v48 = vld [vmem:[%s0 + $0x20] sm:$0xf]
    %v49 = vld [vmem:[%s0 + $0x24] sm:$0xf]
    %v50 = vld [vmem:[%s0 + $0x28] sm:$0xf]
    %v51 = vld [vmem:[%s0 + $0x2c] sm:$0xf]
    %v52 = vld [vmem:[%s0 + $0x30] sm:$0xf]
    %v53 = vld [vmem:[%s0 + $0x34] sm:$0xf]
    %v54 = vld [vmem:[%s0 + $0x38] sm:$0xf]
    %v55 = vld [vmem:[%s0 + $0x3c] sm:$0xf]
    %v56 = vld [vmem:[%s1] sm:$0xff]
    %v57 = vld [vmem:[%s1 + $0x8] sm:$0xff]
    %v58 = vld [vmem:[%s1 + $0x10] sm:$0xff]
    %v59 = vld [vmem:[%s1 + $0x18] sm:$0xff]
    %v60 = vld [vmem:[%s1 + $0x20] sm:$0xff]
    %v77 = vunpack.c.l.b16 %v40
    %v78 = vunpack.c.l.b16 %v41
    %v79 = vunpack.c.l.b16 %v42
    %v80 = vunpack.c.l.b16 %v43
    %v81 = vunpack.c.l.b16 %v44
    %v82 = vunpack.c.l.b16 %v45
    %v83 = vunpack.c.l.b16 %v46
    %v84 = vunpack.c.l.b16 %v47
    %v85 = vunpack.c.l.b16 %v48
    %v86 = vunpack.c.l.b16 %v49
    %v87 = vunpack.c.l.b16 %v50
    %v88 = vunpack.c.l.b16 %v51
    %v89 = vunpack.c.l.b16 %v52
    %v90 = vunpack.c.l.b16 %v53
    %v91 = vunpack.c.l.b16 %v54
    %v92 = vunpack.c.l.b16 %v55
    %v93 = vpack.c.b16 %v78, %v77
    %v94 = vpack.c.b16 %v80, %v79
    %v95 = vpack.c.b16 %v82, %v81
    %v96 = vpack.c.b16 %v84, %v83
    %v97 = vpack.c.b16 %v86, %v85
    %v98 = vpack.c.b16 %v88, %v87
    %v99 = vpack.c.b16 %v90, %v89
    %v100 = vpack.c.b16 %v92, %v91
    %v106 = vunpack.c.l.b16 %v56
    %v107 = vunpack.c.h.b16 %v56
    %v108 = vunpack.c.l.b16 %v57
    %v109 = vunpack.c.h.b16 %v57
    %v110 = vunpack.c.l.b16 %v58
    %v111 = vunpack.c.h.b16 %v58
    %v112 = vunpack.c.l.b16 %v59
    %v113 = vunpack.c.h.b16 %v59
    %v114 = vunpack.c.l.b16 %v60
    %v115 = vunpack.c.h.b16 %v60
    %v116 = vpack.c.b16 %v108, %v106
    %v117 = vpack.c.b16 %v109, %v107
    %v118 = vpack.c.b16 %v112, %v110
    %v119 = vpack.c.b16 %v113, %v111
    %v120 = vpack.c.b16 %v114, %v114
    %v121 = vpack.c.b16 %v115, %v115
    %vm126 = vcmask 326656
    %v128 = vsel %vm126, %v93, 0
    %v131 = vsel %vm126, %v94, 0
    %v134 = vsel %vm126, %v95, 0
    %v137 = vsel %vm126, %v96, 0
    %v140 = vsel %vm126, %v97, 0
    %v143 = vsel %vm126, %v98, 0
    %v146 = vsel %vm126, %v99, 0
    %v149 = vsel %vm126, %v100, 0
    %vm151 = vcmask 1043456
    %v153 = vsel %vm151, %v120, 0
    %v156 = vsel %vm151, %v121, 0
    %158 = vmatprep.subr.bf16.mxu0 0
    %159 = vmatpush1.bf16.msra.mxu0 0
    %160 = vmatprep.subr.bf16.mxu0 0
    %161 = vmatpush1.bf16.msra.mxu0 0
    %162 = vmatprep.subr.bf16.mxu0 0
    %163 = vmatpush1.bf16.msra.mxu0 0
    %164 = vmatprep.subr.bf16.mxu0 0
    %165 = vmatpush1.bf16.msra.mxu0 0
    %166 = vmatprep.subr.bf16.mxu0 0
    %167 = vmatpush1.bf16.msra.mxu0 0
    %168 = vmatprep.subr.bf16.mxu0 %v156
    %169 = vmatpush1.bf16.msra.mxu0 %v153
    %170 = vmatprep.subr.bf16.mxu0 %v119
    %171 = vmatpush1.bf16.msra.mxu0 %v118
    %172 = vmatprep.subr.bf16.mxu0 %v117
    %173 = vmatpush1.bf16.msra.mxu0 %v116
    %174 = vmatprep.subr.bf16.mxu0 0
    %175 = vmatpush2.bf16.msra.mxu0 0
    %176 = vmatprep.subr.bf16.mxu0 0
    %177 = vmatpush2.bf16.msra.mxu0 0
    %178 = vmatprep.subr.bf16.mxu0 0
    %179 = vmatpush2.bf16.msra.mxu0 0
    %180 = vmatprep.subr.bf16.mxu0 0
    %181 = vmatpush2.bf16.msra.mxu0 0
    %182 = vmatprep.subr.bf16.mxu0 0
    %183 = vmatpush2.bf16.msra.mxu0 0
    %184 = vmatprep.subr.bf16.mxu0 0
    %185 = vmatpush2.bf16.msra.mxu0 0
    %186 = vmatprep.subr.bf16.mxu0 0
    %187 = vmatpush2.bf16.msra.mxu0 0
    %188 = vmatprep.subr.bf16.mxu0 0
    %189 = vmatpush2.bf16.msra.mxu0 0
    %190 = vmatprep.mubr.bf16.mxu0 0
    %191 = vmatmul.mubr.bf16.gmra.mxu0 %v128
    %v192 = vpop.f32.mrf.mxu0
    %v193 = vadd.f32 0.0, %v192
    %v194 = vpop.f32.mrf.mxu0
    %v195 = vadd.f32 0.0, %v194
    %v196 = vpop.f32.mrf.mxu0
    %v197 = vadd.f32 0.0, %v196
    %v198 = vpop.f32.mrf.mxu0
    %v199 = vadd.f32 0.0, %v198
    %200 = vmatprep.mubr.bf16.mxu0 0
    %201 = vmatmul.mubr.bf16.gmra.mxu0 %v131
    %v202 = vpop.f32.mrf.mxu0
    %v203 = vadd.f32 0.0, %v202
    %v204 = vpop.f32.mrf.mxu0
    %v205 = vadd.f32 0.0, %v204
    %v206 = vpop.f32.mrf.mxu0
    %v207 = vadd.f32 0.0, %v206
    %v208 = vpop.f32.mrf.mxu0
    %v209 = vadd.f32 0.0, %v208
    %210 = vmatprep.mubr.bf16.mxu0 0
    %211 = vmatmul.mubr.bf16.gmra.mxu0 %v134
    %v212 = vpop.f32.mrf.mxu0
    %v213 = vadd.f32 0.0, %v212
    %v214 = vpop.f32.mrf.mxu0
    %v215 = vadd.f32 0.0, %v214
    %v216 = vpop.f32.mrf.mxu0
    %v217 = vadd.f32 0.0, %v216
    %v218 = vpop.f32.mrf.mxu0
    %v219 = vadd.f32 0.0, %v218
    %220 = vmatprep.mubr.bf16.mxu0 0
    %221 = vmatmul.mubr.bf16.gmra.mxu0 %v137
    %v222 = vpop.f32.mrf.mxu0
    %v223 = vadd.f32 0.0, %v222
    %v224 = vpop.f32.mrf.mxu0
    %v225 = vadd.f32 0.0, %v224
    %v226 = vpop.f32.mrf.mxu0
    %v227 = vadd.f32 0.0, %v226
    %v228 = vpop.f32.mrf.mxu0
    %v229 = vadd.f32 0.0, %v228
    %230 = vmatprep.mubr.bf16.mxu0 0
    %231 = vmatmul.mubr.bf16.gmra.mxu0 %v140
    %v232 = vpop.f32.mrf.mxu0
    %v233 = vadd.f32 0.0, %v232
    %v234 = vpop.f32.mrf.mxu0
    %v235 = vadd.f32 0.0, %v234
    %v236 = vpop.f32.mrf.mxu0
    %v237 = vadd.f32 0.0, %v236
    %v238 = vpop.f32.mrf.mxu0
    %v239 = vadd.f32 0.0, %v238
    %240 = vmatprep.mubr.bf16.mxu0 0
    %241 = vmatmul.mubr.bf16.gmra.mxu0 %v143
    %v242 = vpop.f32.mrf.mxu0
    %v243 = vadd.f32 0.0, %v242
    %v244 = vpop.f32.mrf.mxu0
    %v245 = vadd.f32 0.0, %v244
    %v246 = vpop.f32.mrf.mxu0
    %v247 = vadd.f32 0.0, %v246
    %v248 = vpop.f32.mrf.mxu0
    %v249 = vadd.f32 0.0, %v248
    %250 = vmatprep.mubr.bf16.mxu0 0
    %251 = vmatmul.mubr.bf16.gmra.mxu0 %v146
    %v252 = vpop.f32.mrf.mxu0
    %v253 = vadd.f32 0.0, %v252
    %v254 = vpop.f32.mrf.mxu0
    %v255 = vadd.f32 0.0, %v254
    %v256 = vpop.f32.mrf.mxu0
    %v257 = vadd.f32 0.0, %v256
    %v258 = vpop.f32.mrf.mxu0
    %v259 = vadd.f32 0.0, %v258
    %260 = vmatprep.mubr.bf16.mxu0 0
    %261 = vmatmul.mubr.bf16.gmra.mxu0 %v149
    %v262 = vpop.f32.mrf.mxu0
    %v263 = vadd.f32 0.0, %v262
    %v264 = vpop.f32.mrf.mxu0
    %v265 = vadd.f32 0.0, %v264
    %v266 = vpop.f32.mrf.mxu0
    %v267 = vadd.f32 0.0, %v266
    %v268 = vpop.f32.mrf.mxu0
    %v269 = vadd.f32 0.0, %v268
    %270 = vdwg.mxu0
    %v271 = vmax.f32 %v193, 0.0
    %v272 = vmax.f32 %v195, 0.0
    %v273 = vmax.f32 %v197, 0.0
    %v274 = vmax.f32 %v199, 0.0
    %v275 = vmax.f32 %v203, 0.0
    %v276 = vmax.f32 %v205, 0.0
    %v277 = vmax.f32 %v207, 0.0
    %v278 = vmax.f32 %v209, 0.0
    %v279 = vmax.f32 %v213, 0.0
    %v280 = vmax.f32 %v215, 0.0
    %v281 = vmax.f32 %v217, 0.0
    %v282 = vmax.f32 %v219, 0.0
    %v283 = vmax.f32 %v223, 0.0
    %v284 = vmax.f32 %v225, 0.0
    %v285 = vmax.f32 %v227, 0.0
    %v286 = vmax.f32 %v229, 0.0
    %v287 = vmax.f32 %v233, 0.0
    %v288 = vmax.f32 %v235, 0.0
    %v289 = vmax.f32 %v237, 0.0
    %v290 = vmax.f32 %v239, 0.0
    %v291 = vmax.f32 %v243, 0.0
    %v292 = vmax.f32 %v245, 0.0
    %v293 = vmax.f32 %v247, 0.0
    %v294 = vmax.f32 %v249, 0.0
    %v295 = vmax.f32 %v253, 0.0
    %v296 = vmax.f32 %v255, 0.0
    %v297 = vmax.f32 %v257, 0.0
    %v298 = vmax.f32 %v259, 0.0
    %v299 = vmax.f32 %v263, 0.0
    %v300 = vmax.f32 %v265, 0.0
    %v301 = vmax.f32 %v267, 0.0
    %v302 = vmax.f32 %v269, 0.0
    %v303 = vpack.c.bf16 %v273, %v271
    %v304 = vpack.c.bf16 %v274, %v272
    %v305 = vpack.c.bf16 %v277, %v275
    %v306 = vpack.c.bf16 %v278, %v276
    %v307 = vpack.c.bf16 %v281, %v279
    %v308 = vpack.c.bf16 %v282, %v280
    %v309 = vpack.c.bf16 %v285, %v283
    %v310 = vpack.c.bf16 %v286, %v284
    %v311 = vpack.c.bf16 %v289, %v287
    %v312 = vpack.c.bf16 %v290, %v288
    %v313 = vpack.c.bf16 %v293, %v291
    %v314 = vpack.c.bf16 %v294, %v292
    %v315 = vpack.c.bf16 %v297, %v295
    %v316 = vpack.c.bf16 %v298, %v296
    %v317 = vpack.c.bf16 %v301, %v299
    %v318 = vpack.c.bf16 %v302, %v300
    %v319 = vld [vmem:[#allocation3] sm:$0xff]
    %v320 = vld [vmem:[#allocation3 + $0x8] sm:$0xff]
    %v321 = vld [vmem:[#allocation3 + $0x10] sm:$0xff]
    %v322 = vld [vmem:[#allocation3 + $0x18] sm:$0xff]
    %v323 = vld [vmem:[#allocation3 + $0x20] sm:$0xff]
    %v324 = vld [vmem:[#allocation3 + $0x28] sm:$0xff]
    %v325 = vld [vmem:[#allocation3 + $0x30] sm:$0xff]
    %v326 = vld [vmem:[#allocation3 + $0x38] sm:$0xff]
    %v327 = vld [vmem:[#allocation3 + $0x40] sm:$0xff]
    %v328 = vld [vmem:[#allocation3 + $0x48] sm:$0xff]
    %v329 = vld [vmem:[#allocation3 + $0x50] sm:$0xff]
    %v330 = vld [vmem:[#allocation3 + $0x58] sm:$0xff]
    %v331 = vld [vmem:[#allocation3 + $0x60] sm:$0xff]
    %v332 = vld [vmem:[#allocation3 + $0x68] sm:$0xff]
    %v333 = vld [vmem:[#allocation3 + $0x70] sm:$0xff]
    %v334 = vld [vmem:[#allocation3 + $0x78] sm:$0xff]
    %v335 = vld [vmem:[#allocation3 + $0x80] sm:$0xff]
    %v336 = vld [vmem:[#allocation3 + $0x88] sm:$0xff]
    %v337 = vld [vmem:[#allocation3 + $0x90] sm:$0xff]
    %v338 = vld [vmem:[#allocation3 + $0x98] sm:$0xff]
    %v339 = vld [vmem:[#allocation3 + $0xa0] sm:$0xff]
    %v340 = vld [vmem:[#allocation3 + $0xa8] sm:$0xff]
    %v341 = vld [vmem:[#allocation3 + $0xb0] sm:$0xff]
    %v342 = vld [vmem:[#allocation3 + $0xb8] sm:$0xff]
    %v343 = vld [vmem:[#allocation3 + $0xc0] sm:$0xff]
    %v344 = vld [vmem:[#allocation3 + $0xc8] sm:$0xff]
    %v345 = vld [vmem:[#allocation3 + $0xd0] sm:$0xff]
    %v346 = vld [vmem:[#allocation3 + $0xd8] sm:$0xff]
    %v347 = vld [vmem:[#allocation3 + $0xe0] sm:$0xff]
    %v348 = vld [vmem:[#allocation3 + $0xe8] sm:$0xff]
    %v349 = vld [vmem:[#allocation3 + $0xf0] sm:$0xff]
    %v350 = vld [vmem:[#allocation3 + $0xf8] sm:$0xff]
    %v351 = vld [vmem:[%s3] sm:$0x3]
    %v353 = vlaneseq
    %v354 = vshrl.u32 %v353, 7
    %v355 = vsub.s32 0, %v354
    %v356 = vrot.slane %v351, %v355
    %v357 = vlaneseq
    %v358 = vshrl.u32 %v357, 7
    %v359 = vsub.s32 1, %v358
    %v360 = vrot.slane %v351, %v359
    %v395 = vunpack.c.l.b16 %v319
    %v396 = vunpack.c.h.b16 %v319
    %v397 = vunpack.c.l.b16 %v320
    %v398 = vunpack.c.h.b16 %v320
    %v399 = vunpack.c.l.b16 %v321
    %v400 = vunpack.c.h.b16 %v321
    %v401 = vunpack.c.l.b16 %v322
    %v402 = vunpack.c.h.b16 %v322
    %v403 = vunpack.c.l.b16 %v323
    %v404 = vunpack.c.h.b16 %v323
    %v405 = vunpack.c.l.b16 %v324
    %v406 = vunpack.c.h.b16 %v324
    %v407 = vunpack.c.l.b16 %v325
    %v408 = vunpack.c.h.b16 %v325
    %v409 = vunpack.c.l.b16 %v326
    %v410 = vunpack.c.h.b16 %v326
    %v411 = vunpack.c.l.b16 %v327
    %v412 = vunpack.c.h.b16 %v327
    %v413 = vunpack.c.l.b16 %v328
    %v414 = vunpack.c.h.b16 %v328
    %v415 = vunpack.c.l.b16 %v329
    %v416 = vunpack.c.h.b16 %v329
    %v417 = vunpack.c.l.b16 %v330
    %v418 = vunpack.c.h.b16 %v330
    %v419 = vunpack.c.l.b16 %v331
    %v420 = vunpack.c.h.b16 %v331
    %v421 = vunpack.c.l.b16 %v332
    %v422 = vunpack.c.h.b16 %v332
    %v423 = vunpack.c.l.b16 %v333
    %v424 = vunpack.c.h.b16 %v333
    %v425 = vunpack.c.l.b16 %v334
    %v426 = vunpack.c.h.b16 %v334
    %v427 = vunpack.c.l.b16 %v335
    %v428 = vunpack.c.h.b16 %v335
    %v429 = vunpack.c.l.b16 %v336
    %v430 = vunpack.c.h.b16 %v336
    %v431 = vunpack.c.l.b16 %v337
    %v432 = vunpack.c.h.b16 %v337
    %v433 = vunpack.c.l.b16 %v338
    %v434 = vunpack.c.h.b16 %v338
    %v435 = vunpack.c.l.b16 %v339
    %v436 = vunpack.c.h.b16 %v339
    %v437 = vunpack.c.l.b16 %v340
    %v438 = vunpack.c.h.b16 %v340
    %v439 = vunpack.c.l.b16 %v341
    %v440 = vunpack.c.h.b16 %v341
    %v441 = vunpack.c.l.b16 %v342
    %v442 = vunpack.c.h.b16 %v342
    %v443 = vunpack.c.l.b16 %v343
    %v444 = vunpack.c.h.b16 %v343
    %v445 = vunpack.c.l.b16 %v344
    %v446 = vunpack.c.h.b16 %v344
    %v447 = vunpack.c.l.b16 %v345
    %v448 = vunpack.c.h.b16 %v345
    %v449 = vunpack.c.l.b16 %v346
    %v450 = vunpack.c.h.b16 %v346
    %v451 = vunpack.c.l.b16 %v347
    %v452 = vunpack.c.h.b16 %v347
    %v453 = vunpack.c.l.b16 %v348
    %v454 = vunpack.c.h.b16 %v348
    %v455 = vunpack.c.l.b16 %v349
    %v456 = vunpack.c.h.b16 %v349
    %v457 = vunpack.c.l.b16 %v350
    %v458 = vunpack.c.h.b16 %v350
    %v459 = vpack.c.b16 %v397, %v395
    %v460 = vpack.c.b16 %v398, %v396
    %v461 = vpack.c.b16 %v401, %v399
    %v462 = vpack.c.b16 %v402, %v400
    %v463 = vpack.c.b16 %v405, %v403
    %v464 = vpack.c.b16 %v406, %v404
    %v465 = vpack.c.b16 %v409, %v407
    %v466 = vpack.c.b16 %v410, %v408
    %v467 = vpack.c.b16 %v413, %v411
    %v468 = vpack.c.b16 %v414, %v412
    %v469 = vpack.c.b16 %v417, %v415
    %v470 = vpack.c.b16 %v418, %v416
    %v471 = vpack.c.b16 %v421, %v419
    %v472 = vpack.c.b16 %v422, %v420
    %v473 = vpack.c.b16 %v425, %v423
    %v474 = vpack.c.b16 %v426, %v424
    %v475 = vpack.c.b16 %v429, %v427
    %v476 = vpack.c.b16 %v430, %v428
    %v477 = vpack.c.b16 %v433, %v431
    %v478 = vpack.c.b16 %v434, %v432
    %v479 = vpack.c.b16 %v437, %v435
    %v480 = vpack.c.b16 %v438, %v436
    %v481 = vpack.c.b16 %v441, %v439
    %v482 = vpack.c.b16 %v442, %v440
    %v483 = vpack.c.b16 %v445, %v443
    %v484 = vpack.c.b16 %v446, %v444
    %v485 = vpack.c.b16 %v449, %v447
    %v486 = vpack.c.b16 %v450, %v448
    %v487 = vpack.c.b16 %v453, %v451
    %v488 = vpack.c.b16 %v454, %v452
    %v489 = vpack.c.b16 %v457, %v455
    %v490 = vpack.c.b16 %v458, %v456
    %523 = vmatprep.subr.bf16.mxu0 %v474
    %524 = vmatpush1.bf16.msra.mxu0 %v473
    %525 = vmatprep.subr.bf16.mxu0 %v472
    %526 = vmatpush1.bf16.msra.mxu0 %v471
    %527 = vmatprep.subr.bf16.mxu0 %v470
    %528 = vmatpush1.bf16.msra.mxu0 %v469
    %529 = vmatprep.subr.bf16.mxu0 %v468
    %530 = vmatpush1.bf16.msra.mxu0 %v467
    %531 = vmatprep.subr.bf16.mxu0 %v466
    %532 = vmatpush1.bf16.msra.mxu0 %v465
    %533 = vmatprep.subr.bf16.mxu0 %v464
    %534 = vmatpush1.bf16.msra.mxu0 %v463
    %535 = vmatprep.subr.bf16.mxu0 %v462
    %536 = vmatpush1.bf16.msra.mxu0 %v461
    %537 = vmatprep.subr.bf16.mxu0 %v460
    %538 = vmatpush1.bf16.msra.mxu0 %v459
    %539 = vmatprep.subr.bf16.mxu0 %v490
    %540 = vmatpush2.bf16.msra.mxu0 %v489
    %541 = vmatprep.subr.bf16.mxu0 %v488
    %542 = vmatpush2.bf16.msra.mxu0 %v487
    %543 = vmatprep.subr.bf16.mxu0 %v486
    %544 = vmatpush2.bf16.msra.mxu0 %v485
    %545 = vmatprep.subr.bf16.mxu0 %v484
    %546 = vmatpush2.bf16.msra.mxu0 %v483
    %547 = vmatprep.subr.bf16.mxu0 %v482
    %548 = vmatpush2.bf16.msra.mxu0 %v481
    %549 = vmatprep.subr.bf16.mxu0 %v480
    %550 = vmatpush2.bf16.msra.mxu0 %v479
    %551 = vmatprep.subr.bf16.mxu0 %v478
    %552 = vmatpush2.bf16.msra.mxu0 %v477
    %553 = vmatprep.subr.bf16.mxu0 %v476
    %554 = vmatpush2.bf16.msra.mxu0 %v475
    %555 = vmatprep.mubr.bf16.mxu0 %v304
    %556 = vmatmul.mubr.bf16.gmra.mxu0 %v303
    %v557 = vpop.f32.mrf.mxu0
    %v558 = vadd.f32 %v356, %v557
    %v559 = vpop.f32.mrf.mxu0
    %v560 = vadd.f32 %v360, %v559
    %v561 = vpop.f32.mrf.mxu0
    %v562 = vadd.f32 %v356, %v561
    %v563 = vpop.f32.mrf.mxu0
    %v564 = vadd.f32 %v360, %v563
    %565 = vmatprep.mubr.bf16.mxu0 %v306
    %566 = vmatmul.mubr.bf16.gmra.mxu0 %v305
    %v567 = vpop.f32.mrf.mxu0
    %v568 = vadd.f32 %v356, %v567
    %v569 = vpop.f32.mrf.mxu0
    %v570 = vadd.f32 %v360, %v569
    %v571 = vpop.f32.mrf.mxu0
    %v572 = vadd.f32 %v356, %v571
    %v573 = vpop.f32.mrf.mxu0
    %v574 = vadd.f32 %v360, %v573
    %575 = vmatprep.mubr.bf16.mxu0 %v308
    %576 = vmatmul.mubr.bf16.gmra.mxu0 %v307
    %v577 = vpop.f32.mrf.mxu0
    %v578 = vadd.f32 %v356, %v577
    %v579 = vpop.f32.mrf.mxu0
    %v580 = vadd.f32 %v360, %v579
    %v581 = vpop.f32.mrf.mxu0
    %v582 = vadd.f32 %v356, %v581
    %v583 = vpop.f32.mrf.mxu0
    %v584 = vadd.f32 %v360, %v583
    %585 = vmatprep.mubr.bf16.mxu0 %v310
    %586 = vmatmul.mubr.bf16.gmra.mxu0 %v309
    %v587 = vpop.f32.mrf.mxu0
    %v588 = vadd.f32 %v356, %v587
    %v589 = vpop.f32.mrf.mxu0
    %v590 = vadd.f32 %v360, %v589
    %v591 = vpop.f32.mrf.mxu0
    %v592 = vadd.f32 %v356, %v591
    %v593 = vpop.f32.mrf.mxu0
    %v594 = vadd.f32 %v360, %v593
    %595 = vmatprep.mubr.bf16.mxu0 %v312
    %596 = vmatmul.mubr.bf16.gmra.mxu0 %v311
    %v597 = vpop.f32.mrf.mxu0
    %v598 = vadd.f32 %v356, %v597
    %v599 = vpop.f32.mrf.mxu0
    %v600 = vadd.f32 %v360, %v599
    %v601 = vpop.f32.mrf.mxu0
    %v602 = vadd.f32 %v356, %v601
    %v603 = vpop.f32.mrf.mxu0
    %v604 = vadd.f32 %v360, %v603
    %605 = vmatprep.mubr.bf16.mxu0 %v314
    %606 = vmatmul.mubr.bf16.gmra.mxu0 %v313
    %v607 = vpop.f32.mrf.mxu0
    %v608 = vadd.f32 %v356, %v607
    %v609 = vpop.f32.mrf.mxu0
    %v610 = vadd.f32 %v360, %v609
    %v611 = vpop.f32.mrf.mxu0
    %v612 = vadd.f32 %v356, %v611
    %v613 = vpop.f32.mrf.mxu0
    %v614 = vadd.f32 %v360, %v613
    %615 = vmatprep.mubr.bf16.mxu0 %v316
    %616 = vmatmul.mubr.bf16.gmra.mxu0 %v315
    %v617 = vpop.f32.mrf.mxu0
    %v618 = vadd.f32 %v356, %v617
    %v619 = vpop.f32.mrf.mxu0
    %v620 = vadd.f32 %v360, %v619
    %v621 = vpop.f32.mrf.mxu0
    %v622 = vadd.f32 %v356, %v621
    %v623 = vpop.f32.mrf.mxu0
    %v624 = vadd.f32 %v360, %v623
    %625 = vmatprep.mubr.bf16.mxu0 %v318
    %626 = vmatmul.mubr.bf16.gmra.mxu0 %v317
    %v627 = vpop.f32.mrf.mxu0
    %v628 = vadd.f32 %v356, %v627
    %v629 = vpop.f32.mrf.mxu0
    %v630 = vadd.f32 %v360, %v629
    %v631 = vpop.f32.mrf.mxu0
    %v632 = vadd.f32 %v356, %v631
    %v633 = vpop.f32.mrf.mxu0
    %v634 = vadd.f32 %v360, %v633
    %635 = vdwg.mxu0
    %v636 = vmax.f32 %v558, 0.0
    %v637 = vmax.f32 %v560, 0.0
    %v638 = vmax.f32 %v562, 0.0
    %v639 = vmax.f32 %v564, 0.0
    %v640 = vmax.f32 %v568, 0.0
    %v641 = vmax.f32 %v570, 0.0
    %v642 = vmax.f32 %v572, 0.0
    %v643 = vmax.f32 %v574, 0.0
    %v644 = vmax.f32 %v578, 0.0
    %v645 = vmax.f32 %v580, 0.0
    %v646 = vmax.f32 %v582, 0.0
    %v647 = vmax.f32 %v584, 0.0
    %v648 = vmax.f32 %v588, 0.0
    %v649 = vmax.f32 %v590, 0.0
    %v650 = vmax.f32 %v592, 0.0
    %v651 = vmax.f32 %v594, 0.0
    %v652 = vmax.f32 %v598, 0.0
    %v653 = vmax.f32 %v600, 0.0
    %v654 = vmax.f32 %v602, 0.0
    %v655 = vmax.f32 %v604, 0.0
    %v656 = vmax.f32 %v608, 0.0
    %v657 = vmax.f32 %v610, 0.0
    %v658 = vmax.f32 %v612, 0.0
    %v659 = vmax.f32 %v614, 0.0
    %v660 = vmax.f32 %v618, 0.0
    %v661 = vmax.f32 %v620, 0.0
    %v662 = vmax.f32 %v622, 0.0
    %v663 = vmax.f32 %v624, 0.0
    %v664 = vmax.f32 %v628, 0.0
    %v665 = vmax.f32 %v630, 0.0
    %v666 = vmax.f32 %v632, 0.0
    %v667 = vmax.f32 %v634, 0.0
    %v668 = vld [vmem:[%s4] sm:$0x3]
    %v670 = vlaneseq
    %v671 = vshrl.u32 %v670, 7
    %v672 = vsub.s32 0, %v671
    %v673 = vrot.slane %v668, %v672
    %v674 = vlaneseq
    %v675 = vshrl.u32 %v674, 7
    %v676 = vsub.s32 1, %v675
    %v677 = vrot.slane %v668, %v676
    %v680 = vmul.f32 %v636, %v673
    %v681 = vmul.f32 %v637, %v677
    %v682 = vmul.f32 %v638, %v673
    %v683 = vmul.f32 %v639, %v677
    %v684 = vmul.f32 %v640, %v673
    %v685 = vmul.f32 %v641, %v677
    %v686 = vmul.f32 %v642, %v673
    %v687 = vmul.f32 %v643, %v677
    %v688 = vmul.f32 %v644, %v673
    %v689 = vmul.f32 %v645, %v677
    %v690 = vmul.f32 %v646, %v673
    %v691 = vmul.f32 %v647, %v677
    %v692 = vmul.f32 %v648, %v673
    %v693 = vmul.f32 %v649, %v677
    %v694 = vmul.f32 %v650, %v673
    %v695 = vmul.f32 %v651, %v677
    %v696 = vmul.f32 %v652, %v673
    %v697 = vmul.f32 %v653, %v677
    %v698 = vmul.f32 %v654, %v673
    %v699 = vmul.f32 %v655, %v677
    %v700 = vmul.f32 %v656, %v673
    %v701 = vmul.f32 %v657, %v677
    %v702 = vmul.f32 %v658, %v673
    %v703 = vmul.f32 %v659, %v677
    %v704 = vmul.f32 %v660, %v673
    %v705 = vmul.f32 %v661, %v677
    %v706 = vmul.f32 %v662, %v673
    %v707 = vmul.f32 %v663, %v677
    %v708 = vmul.f32 %v664, %v673
    %v709 = vmul.f32 %v665, %v677
    %v710 = vmul.f32 %v666, %v673
    %v711 = vmul.f32 %v667, %v677
    %v712 = vadd.f32 %v680, %v681
    %713 = vadd.xlane.f32.xlu0 %v712
    %v714 = vpop.xlane.xlu0 %713
    %v715 = vadd.f32 %v682, %v683
    %716 = vadd.xlane.f32.xlu0 %v715
    %v717 = vpop.xlane.xlu0 %716
    %v718 = vadd.f32 %v684, %v685
    %719 = vadd.xlane.f32.xlu0 %v718
    %v720 = vpop.xlane.xlu0 %719
    %v721 = vadd.f32 %v686, %v687
    %722 = vadd.xlane.f32.xlu0 %v721
    %v723 = vpop.xlane.xlu0 %722
    %v724 = vadd.f32 %v688, %v689
    %725 = vadd.xlane.f32.xlu0 %v724
    %v726 = vpop.xlane.xlu0 %725
    %v727 = vadd.f32 %v690, %v691
    %728 = vadd.xlane.f32.xlu0 %v727
    %v729 = vpop.xlane.xlu0 %728
    %v730 = vadd.f32 %v692, %v693
    %731 = vadd.xlane.f32.xlu0 %v730
    %v732 = vpop.xlane.xlu0 %731
    %v733 = vadd.f32 %v694, %v695
    %734 = vadd.xlane.f32.xlu0 %v733
    %v735 = vpop.xlane.xlu0 %734
    %v736 = vadd.f32 %v696, %v697
    %737 = vadd.xlane.f32.xlu0 %v736
    %v738 = vpop.xlane.xlu0 %737
    %v739 = vadd.f32 %v698, %v699
    %740 = vadd.xlane.f32.xlu0 %v739
    %v741 = vpop.xlane.xlu0 %740
    %v742 = vadd.f32 %v700, %v701
    %743 = vadd.xlane.f32.xlu0 %v742
    %v744 = vpop.xlane.xlu0 %743
    %v745 = vadd.f32 %v702, %v703
    %746 = vadd.xlane.f32.xlu0 %v745
    %v747 = vpop.xlane.xlu0 %746
    %v748 = vadd.f32 %v704, %v705
    %749 = vadd.xlane.f32.xlu0 %v748
    %v750 = vpop.xlane.xlu0 %749
    %v751 = vadd.f32 %v706, %v707
    %752 = vadd.xlane.f32.xlu0 %v751
    %v753 = vpop.xlane.xlu0 %752
    %v754 = vadd.f32 %v708, %v709
    %755 = vadd.xlane.f32.xlu0 %v754
    %v756 = vpop.xlane.xlu0 %755
    %v757 = vadd.f32 %v710, %v711
    %758 = vadd.xlane.f32.xlu0 %v757
    %v759 = vpop.xlane.xlu0 %758
    %v760 = vld [vmem:[#allocation2] sm:$0x1]
    %v762 = vlaneseq
    %v763 = vshrl.u32 %v762, 7
    %v764 = vsub.s32 0, %v763
    %v765 = vrot.slane %v760, %v764
    %v767 = vadd.f32 %v714, %v765
    %v768 = vadd.f32 %v717, %v765
    %v769 = vadd.f32 %v720, %v765
    %v770 = vadd.f32 %v723, %v765
    %v771 = vadd.f32 %v726, %v765
    %v772 = vadd.f32 %v729, %v765
    %v773 = vadd.f32 %v732, %v765
    %v774 = vadd.f32 %v735, %v765
    %v775 = vadd.f32 %v738, %v765
    %v776 = vadd.f32 %v741, %v765
    %v777 = vadd.f32 %v744, %v765
    %v778 = vadd.f32 %v747, %v765
    %v779 = vadd.f32 %v750, %v765
    %v780 = vadd.f32 %v753, %v765
    %v781 = vadd.f32 %v756, %v765
    %v782 = vadd.f32 %v759, %v765
    %vm783 = vcmask 7168
    %784 = vst.msk [vmem:[%s6] sm:$0xff] %vm783, %v767
    %785 = vst.msk [vmem:[%s6 + $0x8] sm:$0xff] %vm783, %v768
    %786 = vst.msk [vmem:[%s6 + $0x10] sm:$0xff] %vm783, %v769
    %787 = vst.msk [vmem:[%s6 + $0x18] sm:$0xff] %vm783, %v770
    %788 = vst.msk [vmem:[%s6 + $0x20] sm:$0xff] %vm783, %v771
    %789 = vst.msk [vmem:[%s6 + $0x28] sm:$0xff] %vm783, %v772
    %790 = vst.msk [vmem:[%s6 + $0x30] sm:$0xff] %vm783, %v773
    %791 = vst.msk [vmem:[%s6 + $0x38] sm:$0xff] %vm783, %v774
    %792 = vst.msk [vmem:[%s6 + $0x40] sm:$0xff] %vm783, %v775
    %793 = vst.msk [vmem:[%s6 + $0x48] sm:$0xff] %vm783, %v776
    %794 = vst.msk [vmem:[%s6 + $0x50] sm:$0xff] %vm783, %v777
    %795 = vst.msk [vmem:[%s6 + $0x58] sm:$0xff] %vm783, %v778
    %796 = vst.msk [vmem:[%s6 + $0x60] sm:$0xff] %vm783, %v779
    %797 = vst.msk [vmem:[%s6 + $0x68] sm:$0xff] %vm783, %v780
    %798 = vst.msk [vmem:[%s6 + $0x70] sm:$0xff] %vm783, %v781
    %799 = vst.msk [vmem:[%s6 + $0x78] sm:$0xff] %vm783, %v782
    // Predicated region
    $region30: #{tpu_custom_call.1} parent=1 // pred_check
      _
    $region31: #{tpu_custom_call.1} parent=1 // pred_check_branch
      %801 = sbr.rel (0) target = $region33
    $region32: #{tpu_custom_call.1} parent=1 // pred_region
      _
    $region33: #{tpu_custom_call.1} parent=1 // pred_fallthru
      _
    // Predicated region
    $region34: #{tpu_custom_call.1} parent=1 // pred_check
      _
    $region35: #{tpu_custom_call.1} parent=1 // pred_check_branch
      %803 = sbr.rel (0) target = $region37
    $region36: #{tpu_custom_call.1} parent=1 // pred_region
      _
    $region37: #{tpu_custom_call.1} parent=1 // pred_fallthru
      _
    %804 = vsyncpa [#allocation4], 1

</llo_original>
